<compile_context>
chip_gen: v7x
topology: tpu7x:2x2x1
jax: 0.10.0
libtpu: 0.0.40
codegen_flags: <defaults>
</compile_context>

<pallas_src>
import jax
import jax.numpy as jnp
from jax.experimental import pallas as pl
from jax.experimental.pallas import tpu as pltpu


def _round_up(x, m):
    return ((x + m - 1) // m) * m


# --------------------------------------------------------------------------
# Kernels
# --------------------------------------------------------------------------
def _mlp_kernel(x_ref, w1_ref, shift_ref, w2_ref, b2_ref, o_ref):
    """Resident-weights path: whole hidden dim per step."""
    h = jnp.dot(x_ref[...], w1_ref[...], preferred_element_type=jnp.float32)
    h = jnp.maximum(h + shift_ref[...], 0.0)              # folded BN+bias, ReLU
    out = jnp.dot(h.astype(w2_ref.dtype), w2_ref[...],
                  preferred_element_type=jnp.float32)
    o_ref[...] = (out + b2_ref[...]).astype(o_ref.dtype)


def _mlp_kernel_ktiled(x_ref, w1_ref, shift_ref, w2_ref, b2_ref, o_ref, acc_ref):
    """Hidden(K)-axis tiled path: acc += relu(x @ w1[:,k] + shift[k]) @ w2[k,:]."""
    k = pl.program_id(1)

    @pl.when(k == 0)
    def _():
        acc_ref[...] = jnp.zeros_like(acc_ref)

    h = jnp.dot(x_ref[...], w1_ref[...], preferred_element_type=jnp.float32)
    h = jnp.maximum(h + shift_ref[...], 0.0)
    acc_ref[...] += jnp.dot(h.astype(w2_ref.dtype), w2_ref[...],
                            preferred_element_type=jnp.float32)

    @pl.when(k == pl.num_programs(1) - 1)
    def _():
        o_ref[...] = (acc_ref[...] + b2_ref[...]).astype(o_ref.dtype)


# --------------------------------------------------------------------------
# Sizing helpers
# --------------------------------------------------------------------------
def _vmem_budget():
    """(vmem_limit_bytes, tile-picker budget) derived from the chip's VMEM."""
    try:
        info = pltpu.get_tpu_info()
        cap = int(getattr(info, "vmem_capacity_bytes", 0)) or (64 << 20)
    except Exception:
        cap = 64 << 20                       # conservative: v7x per-TC VMEM
    vmem_limit = min(cap - (4 << 20), int(cap * 0.9))
    budget = int(vmem_limit * 0.8)           # ~96 MiB v5e/v6e, ~46 MiB v7x
    return vmem_limit, budget


def _pick_batch_tile(B, per_row_bytes, fixed_bytes, budget_bytes,
                     *, min_tile=16, pref_align=256, cap=1024):
    """Largest MXU-aligned batch tile fitting the VMEM budget, with >=2 grid
    steps when the batch is large enough (megacore on v7x)."""
    avail = budget_bytes - fixed_bytes
    tB = max(min_tile, int(avail // max(per_row_bytes, 1)))
    tB = min(tB, cap)
    if tB >= pref_align:
        tB = (tB // pref_align) * pref_align
    else:
        tB = max(min_tile, (tB // min_tile) * min_tile)
    tB = min(tB, _round_up(B, min_tile))
    if B > 2 * min_tile and tB >= B:
        tB = _round_up(-(-B // 2), min_tile)   # cap so the grid has >= 2 steps
    return max(min_tile, tB)


# --------------------------------------------------------------------------
# Do-once parameter preparation (cache/reuse this across forward passes)
# --------------------------------------------------------------------------
def prepare_lazy_projection_params(w1, b1, bn_gamma, bn_beta, bn_mean, bn_var,
                                   w2, b2, *, eps=1e-5,
                                   compute_dtype=jnp.bfloat16,
                                   force_hidden_tile=None):
    """Fold eval-mode BatchNorm + b1 into w1/shift, pad for lane density, and
    decide resident-weights vs hidden-axis tiling.  Weight-sized, do once."""
    in_dim, hidden = w1.shape
    out_dim = w2.shape[1]

    inv_std = 1.0 / jnp.sqrt(bn_var.astype(jnp.float32) + eps)
    scale = bn_gamma.astype(jnp.float32) * inv_std                   # [hidden]
    w1f = w1.astype(jnp.float32) * scale[None, :]                    # fold scale
    shift = (b1.astype(jnp.float32) * scale
             + bn_beta.astype(jnp.float32)
             - bn_mean.astype(jnp.float32) * scale)                  # fold bias

    out_pad = _round_up(out_dim, 128)            # lane-dense output stores
    comp_bytes = jnp.dtype(compute_dtype).itemsize
    vmem_limit, budget = _vmem_budget()

    # Resident-weight footprint (single-buffered): decide on hidden tiling.
    resident_bytes = ((in_dim * hidden + hidden * out_pad) * comp_bytes
                      + (hidden + out_pad) * 4)
    tH = None
    if force_hidden_tile is not None:
        tH = int(force_hidden_tile)
    elif resident_bytes > budget // 2:
        per_chunk = 2 * ((in_dim * 128 + 128 * out_pad) * comp_bytes + 128 * 4)
        tH = max(128, ((budget // 4) // max(per_chunk, 1)) * 128)
        tH = min(tH, _round_up(hidden, 128))

    hidden_pad = hidden if tH is None else _round_up(hidden, tH)

    def pad2(a, rows, cols):
        pr, pc = rows - a.shape[0], cols - a.shape[1]
        return a if (pr == 0 and pc == 0) else jnp.pad(a, ((0, pr), (0, pc)))

    w1f = pad2(w1f, in_dim, hidden_pad)                               # zero cols
    shift_row = pad2(shift.reshape(1, hidden), 1, hidden_pad)         # zero shift
    w2f = pad2(w2.astype(jnp.float32), hidden_pad, out_pad)           # zero rows
    b2_row = pad2(b2.astype(jnp.float32).reshape(1, out_dim), 1, out_pad)

    return dict(
        w1=w1f.astype(compute_dtype),
        shift=shift_row,                      # f32 (VPU epilogue stays f32)
        w2=w2f.astype(compute_dtype),
        b2=b2_row,                            # f32
        out_dim=out_dim,
        hidden_tile=tH,
        vmem_budget=budget,
        vmem_limit=vmem_limit,
    )


# --------------------------------------------------------------------------
# Forward pass
# --------------------------------------------------------------------------
def lazy_projection_mlp_apply(x, params, out_dtype=jnp.float32):
    """x: [B, in_dim] -> [B, out_dim] (out_dtype)."""
    B, in_dim = x.shape
    w1, shift, w2, b2 = params["w1"], params["shift"], params["w2"], params["b2"]
    H, out_pad = w1.shape[1], w2.shape[1]
    out_dim, tH = params["out_dim"], params["hidden_tile"]
    budget, vmem_limit = params["vmem_budget"], params["vmem_limit"]
    comp_bytes = jnp.dtype(w1.dtype).itemsize
    out_bytes = jnp.dtype(out_dtype).itemsize
    x_c = x.astype(w1.dtype)

    def run(single_buffer_residents):
        def spec(shape, index_map, resident=False):
            if resident and single_buffer_residents:
                return pl.BlockSpec(shape, index_map, pipeline_mode=pl.Buffered(1))
            return pl.BlockSpec(shape, index_map)

        if tH is None:
            # ---------------- resident-weights path ----------------
            res_mult = 1 if single_buffer_residents else 2
            fixed = res_mult * ((in_dim * H + H * out_pad) * comp_bytes
                                + (H + out_pad) * 4)
            per_row = (2 * in_dim * comp_bytes        # x double-buffer
                       + 2 * out_pad * out_bytes      # out double-buffer
                       + out_pad * 4                  # pre-store f32 result
                       + H * 4 + H * comp_bytes)      # h (f32) + MXU-dtype cast
            tB = _pick_batch_tile(B, per_row, fixed, budget)
            return pl.pallas_call(
                _mlp_kernel,
                out_shape=jax.ShapeDtypeStruct((B, out_pad), out_dtype),
                grid=(pl.cdiv(B, tB),),               # ragged last block, no pad
                in_specs=[
                    spec((tB, in_dim), lambda i: (i, 0)),
                    spec((in_dim, H), lambda i: (0, 0), resident=True),
                    spec((1, H), lambda i: (0, 0), resident=True),
                    spec((H, out_pad), lambda i: (0, 0), resident=True),
                    spec((1, out_pad), lambda i: (0, 0), resident=True),
                ],
                out_specs=pl.BlockSpec((tB, out_pad), lambda i: (i, 0)),
                compiler_params=pltpu.CompilerParams(
                    dimension_semantics=("parallel",),
                    vmem_limit_bytes=vmem_limit),
            )(x_c, w1, shift, w2, b2)

        # ---------------- hidden(K)-axis tiled fallback ----------------
        nK = H // tH
        fixed = (2 * ((in_dim * tH + tH * out_pad) * comp_bytes + tH * 4)
                 + out_pad * 4)
        per_row = (2 * in_dim * comp_bytes + 2 * out_pad * out_bytes
                   + out_pad * 4                      # f32 accumulator scratch
                   + out_pad * 4                      # pre-store result
                   + tH * 4 + tH * comp_bytes)
        tB = _pick_batch_tile(B, per_row, fixed, budget)
        return pl.pallas_call(
            _mlp_kernel_ktiled,
            out_shape=jax.ShapeDtypeStruct((B, out_pad), out_dtype),
            grid=(pl.cdiv(B, tB), nK),
            in_specs=[
                pl.BlockSpec((tB, in_dim), lambda i, k: (i, 0)),
                pl.BlockSpec((in_dim, tH), lambda i, k: (0, k)),
                pl.BlockSpec((1, tH), lambda i, k: (0, k)),
                pl.BlockSpec((tH, out_pad), lambda i, k: (k, 0)),
                spec((1, out_pad), lambda i, k: (0, 0), resident=True),
            ],
            out_specs=pl.BlockSpec((tB, out_pad), lambda i, k: (i, 0)),
            scratch_shapes=[pltpu.VMEM((tB, out_pad), jnp.float32)],
            compiler_params=pltpu.CompilerParams(
                dimension_semantics=("parallel", "arbitrary"),
                vmem_limit_bytes=vmem_limit),
        )(x_c, w1, shift, w2, b2)

    try:
        out = run(single_buffer_residents=True)
    except Exception:
        # Fallback if this Pallas build rejects the pl.Buffered(1) hint.
        out = run(single_buffer_residents=False)
    return out[:, :out_dim]


def lazy_projection_mlp(x, w1, b1, bn_gamma, bn_beta, bn_mean, bn_var, w2, b2,
                        eps=1e-5, compute_dtype=jnp.bfloat16,
                        out_dtype=jnp.float32, force_hidden_tile=None):
    """Convenience wrapper (prepare + apply).  Cache `prepare_*` in real use."""
    params = prepare_lazy_projection_params(
        w1, b1, bn_gamma, bn_beta, bn_mean, bn_var, w2, b2, eps=eps,
        compute_dtype=compute_dtype, force_hidden_tile=force_hidden_tile)
    return lazy_projection_mlp_apply(x, params, out_dtype=out_dtype)


# --------------------------------------------------------------------------
# Reference + tests
# --------------------------------------------------------------------------
def _xavier_uniform(key, fan_in, fan_out, shape):
    bound = (6.0 / (fan_in + fan_out)) ** 0.5
    return jax.random.uniform(key, shape, jnp.float32, minval=-bound, maxval=bound)


def _reference(x, w1, b1, g, beta, mean, var, w2, b2, eps=1e-5):
    hp = jax.lax.Precision.HIGHEST
    h = jnp.dot(x, w1, precision=hp) + b1
    h = (h - mean) / jnp.sqrt(var + eps) * g + beta
    h = jnp.maximum(h, 0.0)                 # Dropout = identity in eval mode
    return jnp.dot(h, w2, precision=hp) + b2


def _make_module(key, in_dim, hidden, out_dim):
    kw1, kw2, kg, kb, km, kv = jax.random.split(key, 6)
    w1 = _xavier_uniform(kw1, in_dim, hidden, (in_dim, hidden))   # stored transposed
    b1 = jnp.full((hidden,), 0.01, jnp.float32)
    w2 = _xavier_uniform(kw2, hidden, out_dim, (hidden, out_dim))
    b2 = jnp.full((out_dim,), 0.01, jnp.float32)
    bn_gamma = 0.5 + jax.random.uniform(kg, (hidden,), jnp.float32)
    bn_beta = 0.1 * jax.random.normal(kb, (hidden,), jnp.float32)
    bn_mean = 0.1 * jax.random.normal(km, (hidden,), jnp.float32)
    bn_var = 0.5 + jax.random.uniform(kv, (hidden,), jnp.float32)
    return (w1, b1, bn_gamma, bn_beta, bn_mean, bn_var, w2, b2)


if __name__ == "__main__":
    key = jax.random.PRNGKey(0)
    k_mod1, k_mod2, k_mod3, kx1, kx2, kx3 = jax.random.split(key, 6)

    # ---- 1) resident-weights path: f32 strict, bf16 (default) loose ----
    B, in_dim, hidden, out_dim = 8, 32, 32, 16
    mod = _make_module(k_mod1, in_dim, hidden, out_dim)
    x = jax.random.normal(kx1, (B, in_dim), jnp.float32)
    ref = _reference(x, *mod)

    params_f32 = prepare_lazy_projection_params(*mod, compute_dtype=jnp.float32)
    out = jax.block_until_ready(lazy_projection_mlp_apply(x, params_f32))
    assert out.shape == (B, out_dim)
    assert jnp.allclose(out, ref, atol=5e-3, rtol=5e-3)

    params_bf16 = prepare_lazy_projection_params(*mod)   # default bf16 MXU inputs
    out_bf16 = jax.block_until_ready(lazy_projection_mlp_apply(x, params_bf16))
    assert out_bf16.shape == (B, out_dim)
    assert bool(jnp.all(jnp.isfinite(out_bf16)))
    assert jnp.allclose(out_bf16, ref, atol=1e-1, rtol=1e-1)

    # ---- 2) ragged last batch tile + >=2 grid steps (no jnp.pad of x) ----
    B2, hidden2 = 40, 64
    mod2 = _make_module(k_mod2, in_dim, hidden2, out_dim)
    x2 = jax.random.normal(kx2, (B2, in_dim), jnp.float32)
    ref2 = _reference(x2, *mod2)
    out2 = jax.block_until_ready(
        lazy_projection_mlp_apply(
            x2, prepare_lazy_projection_params(*mod2, compute_dtype=jnp.float32)))
    assert out2.shape == (B2, out_dim)
    assert jnp.allclose(out2, ref2, atol=5e-3, rtol=5e-3)

    # ---- 3) hidden(K)-axis tiled fallback path (forced at small size) ----
    hidden3 = 256
    mod3 = _make_module(k_mod3, in_dim, hidden3, out_dim)
    x3 = jax.random.normal(kx3, (B, in_dim), jnp.float32)
    ref3 = _reference(x3, *mod3)
    out3 = jax.block_until_ready(
        lazy_projection_mlp_apply(
            x3, prepare_lazy_projection_params(*mod3, compute_dtype=jnp.float32,
                                               force_hidden_tile=128)))
    assert out3.shape == (B, out_dim)
    assert jnp.allclose(out3, ref3, atol=2e-2, rtol=2e-2)

    print("KERNEL_OK")
</pallas_src>

<mosaic_0001>
module attributes {stable_mosaic.version = 11 : i64} {
  func.func @_mlp_kernel(%arg0: i32, %arg1: memref<16x32xf32, #tpu.memory_space<vmem>>, %arg2: memref<32x32xf32, #tpu.memory_space<vmem>>, %arg3: memref<1x32xf32, #tpu.memory_space<vmem>>, %arg4: memref<32x128xf32, #tpu.memory_space<vmem>>, %arg5: memref<1x128xf32, #tpu.memory_space<vmem>>, %arg6: memref<16x128xf32, #tpu.memory_space<vmem>>) attributes {dimension_semantics = [#tpu.dimension_semantics<parallel>], iteration_bounds = array<i64: 1>, scalar_prefetch = 0 : i64, scratch_operands = 0 : i64, tpu.core_type = #tpu.core_type<tc>, window_params = [{transform_indices = @transform_0, window_bounds = array<i64: 16, 32>}, {pipeline_mode = #tpu.pipeline_mode<synchronous>, transform_indices = @transform_1, window_bounds = array<i64: 32, 32>}, {pipeline_mode = #tpu.pipeline_mode<synchronous>, transform_indices = @transform_2, window_bounds = array<i64: 1, 32>}, {pipeline_mode = #tpu.pipeline_mode<synchronous>, transform_indices = @transform_3, window_bounds = array<i64: 32, 128>}, {pipeline_mode = #tpu.pipeline_mode<synchronous>, transform_indices = @transform_4, window_bounds = array<i64: 1, 128>}, {transform_indices = @transform_5, window_bounds = array<i64: 16, 128>}]} {
    %c0 = arith.constant 0 : index
    %c0_0 = arith.constant 0 : index
    %0 = vector.load %arg1[%c0, %c0_0] : memref<16x32xf32, #tpu.memory_space<vmem>>, vector<16x32xf32>
    %c0_1 = arith.constant 0 : index
    %c0_2 = arith.constant 0 : index
    %1 = vector.load %arg2[%c0_1, %c0_2] : memref<32x32xf32, #tpu.memory_space<vmem>>, vector<32x32xf32>
    %cst = arith.constant dense<0.000000e+00> : vector<16x32xf32>
    %2 = tpu.matmul %0, %1, %cst {dimension_numbers = #tpu.dot_dimension_numbers<[1], [0], [0], [1], [0, 0, 1, 1], [], []>} : vector<16x32xf32>, vector<32x32xf32>, vector<16x32xf32> -> vector<16x32xf32>
    %c0_3 = arith.constant 0 : index
    %c0_4 = arith.constant 0 : index
    %3 = vector.load %arg3[%c0_3, %c0_4] : memref<1x32xf32, #tpu.memory_space<vmem>>, vector<1x32xf32>
    %4 = vector.broadcast %3 : vector<1x32xf32> to vector<16x32xf32>
    %5 = arith.addf %2, %4 : vector<16x32xf32>
    %cst_5 = arith.constant 0.000000e+00 : f32
    %6 = vector.broadcast %cst_5 : f32 to vector<16x32xf32>
    %7 = arith.maximumf %5, %6 : vector<16x32xf32>
    %c0_6 = arith.constant 0 : index
    %c0_7 = arith.constant 0 : index
    %8 = vector.load %arg4[%c0_6, %c0_7] : memref<32x128xf32, #tpu.memory_space<vmem>>, vector<32x128xf32>
    %cst_8 = arith.constant dense<0.000000e+00> : vector<16x128xf32>
    %9 = tpu.matmul %7, %8, %cst_8 {dimension_numbers = #tpu.dot_dimension_numbers<[1], [0], [0], [1], [0, 0, 1, 1], [], []>} : vector<16x32xf32>, vector<32x128xf32>, vector<16x128xf32> -> vector<16x128xf32>
    %c0_9 = arith.constant 0 : index
    %c0_10 = arith.constant 0 : index
    %10 = vector.load %arg5[%c0_9, %c0_10] : memref<1x128xf32, #tpu.memory_space<vmem>>, vector<1x128xf32>
    %11 = vector.broadcast %10 : vector<1x128xf32> to vector<16x128xf32>
    %12 = arith.addf %9, %11 : vector<16x128xf32>
    %c0_11 = arith.constant 0 : index
    %c0_12 = arith.constant 0 : index
    %13 = vector.load %arg6[%c0_11, %c0_12] : memref<16x128xf32, #tpu.memory_space<vmem>>, vector<16x128xf32>
    tpu.vector_store %arg6[%c0_11, %c0_12], %12 {strides = array<i32>} : memref<16x128xf32, #tpu.memory_space<vmem>>, vector<16x128xf32>,
    return
  }
  func.func @transform_0(%arg0: i32) -> (i32, i32) {
    %c0_i32 = arith.constant 0 : i32
    %c0_i32_0 = arith.constant 0 : i32
    return %arg0, %c0_i32 : i32, i32
  }
  func.func @transform_1(%arg0: i32) -> (i32, i32) {
    %c0_i32 = arith.constant 0 : i32
    %c0_i32_0 = arith.constant 0 : i32
    %c0_i32_1 = arith.constant 0 : i32
    return %c0_i32, %c0_i32_0 : i32, i32
  }
  func.func @transform_2(%arg0: i32) -> (i32, i32) {
    %c0_i32 = arith.constant 0 : i32
    %c0_i32_0 = arith.constant 0 : i32
    %c0_i32_1 = arith.constant 0 : i32
    return %c0_i32, %c0_i32_0 : i32, i32
  }
  func.func @transform_3(%arg0: i32) -> (i32, i32) {
    %c0_i32 = arith.constant 0 : i32
    %c0_i32_0 = arith.constant 0 : i32
    %c0_i32_1 = arith.constant 0 : i32
    return %c0_i32, %c0_i32_0 : i32, i32
  }
  func.func @transform_4(%arg0: i32) -> (i32, i32) {
    %c0_i32 = arith.constant 0 : i32
    %c0_i32_0 = arith.constant 0 : i32
    %c0_i32_1 = arith.constant 0 : i32
    return %c0_i32, %c0_i32_0 : i32, i32
  }
  func.func @transform_5(%arg0: i32) -> (i32, i32) {
    %c0_i32 = arith.constant 0 : i32
    %c0_i32_0 = arith.constant 0 : i32
    return %arg0, %c0_i32 : i32, i32
  }
}

module attributes {stable_mosaic.version = 11 : i64} {
  func.func @_mlp_kernel(%arg0: i32, %arg1: memref<16x32xf32, #tpu.memory_space<vmem>>, %arg2: memref<32x32xf32, #tpu.memory_space<vmem>>, %arg3: memref<1x32xf32, #tpu.memory_space<vmem>>, %arg4: memref<32x128xf32, #tpu.memory_space<vmem>>, %arg5: memref<1x128xf32, #tpu.memory_space<vmem>>, %arg6: memref<16x128xf32, #tpu.memory_space<vmem>>) attributes {dimension_semantics = [#tpu.dimension_semantics<parallel>], iteration_bounds = array<i64: 1>, scalar_prefetch = 0 : i64, scratch_operands = 0 : i64, tpu.core_type = #tpu.core_type<tc>, window_params = [{transform_indices = @transform_0, window_bounds = array<i64: 16, 32>}, {pipeline_mode = #tpu.pipeline_mode<synchronous>, transform_indices = @transform_1, window_bounds = array<i64: 32, 32>}, {pipeline_mode = #tpu.pipeline_mode<synchronous>, transform_indices = @transform_2, window_bounds = array<i64: 1, 32>}, {pipeline_mode = #tpu.pipeline_mode<synchronous>, transform_indices = @transform_3, window_bounds = array<i64: 32, 128>}, {pipeline_mode = #tpu.pipeline_mode<synchronous>, transform_indices = @transform_4, window_bounds = array<i64: 1, 128>}, {transform_indices = @transform_5, window_bounds = array<i64: 16, 128>}]} {
    %c0 = arith.constant 0 : index
    %c0_0 = arith.constant 0 : index
    %0 = vector.load %arg1[%c0, %c0_0] : memref<16x32xf32, #tpu.memory_space<vmem>>, vector<16x32xf32>
    %c0_1 = arith.constant 0 : index
    %c0_2 = arith.constant 0 : index
    %1 = vector.load %arg2[%c0_1, %c0_2] : memref<32x32xf32, #tpu.memory_space<vmem>>, vector<32x32xf32>
    %cst = arith.constant dense<0.000000e+00> : vector<16x32xf32>
    %2 = tpu.matmul %0, %1, %cst {dimension_numbers = #tpu.dot_dimension_numbers<[1], [0], [0], [1], [0, 0, 1, 1], [], []>} : vector<16x32xf32>, vector<32x32xf32>, vector<16x32xf32> -> vector<16x32xf32>
    %c0_3 = arith.constant 0 : index
    %c0_4 = arith.constant 0 : index
    %3 = vector.load %arg3[%c0_3, %c0_4] : memref<1x32xf32, #tpu.memory_space<vmem>>, vector<1x32xf32>
    %4 = vector.broadcast %3 : vector<1x32xf32> to vector<16x32xf32>
    %5 = arith.addf %2, %4 : vector<16x32xf32>
    %cst_5 = arith.constant 0.000000e+00 : f32
    %6 = vector.broadcast %cst_5 : f32 to vector<16x32xf32>
    %7 = arith.maximumf %5, %6 : vector<16x32xf32>
    %c0_6 = arith.constant 0 : index
    %c0_7 = arith.constant 0 : index
    %8 = vector.load %arg4[%c0_6, %c0_7] : memref<32x128xf32, #tpu.memory_space<vmem>>, vector<32x128xf32>
    %cst_8 = arith.constant dense<0.000000e+00> : vector<16x128xf32>
    %9 = tpu.matmul %7, %8, %cst_8 {dimension_numbers = #tpu.dot_dimension_numbers<[1], [0], [0], [1], [0, 0, 1, 1], [], []>} : vector<16x32xf32>, vector<32x128xf32>, vector<16x128xf32> -> vector<16x128xf32>
    %c0_9 = arith.constant 0 : index
    %c0_10 = arith.constant 0 : index
    %10 = vector.load %arg5[%c0_9, %c0_10] : memref<1x128xf32, #tpu.memory_space<vmem>>, vector<1x128xf32>
    %11 = vector.broadcast %10 : vector<1x128xf32> to vector<16x128xf32>
    %12 = arith.addf %9, %11 : vector<16x128xf32>
    %c0_11 = arith.constant 0 : index
    %c0_12 = arith.constant 0 : index
    %13 = vector.load %arg6[%c0_11, %c0_12] : memref<16x128xf32, #tpu.memory_space<vmem>>, vector<16x128xf32>
    tpu.vector_store %arg6[%c0_11, %c0_12], %12 {strides = array<i32>} : memref<16x128xf32, #tpu.memory_space<vmem>>, vector<16x128xf32>,
    return
  }
  func.func @transform_0(%arg0: i32) -> (i32, i32) {
    %c0_i32 = arith.constant 0 : i32
    %c0_i32_0 = arith.constant 0 : i32
    return %arg0, %c0_i32 : i32, i32
  }
  func.func @transform_1(%arg0: i32) -> (i32, i32) {
    %c0_i32 = arith.constant 0 : i32
    %c0_i32_0 = arith.constant 0 : i32
    %c0_i32_1 = arith.constant 0 : i32
    return %c0_i32, %c0_i32_0 : i32, i32
  }
  func.func @transform_2(%arg0: i32) -> (i32, i32) {
    %c0_i32 = arith.constant 0 : i32
    %c0_i32_0 = arith.constant 0 : i32
    %c0_i32_1 = arith.constant 0 : i32
    return %c0_i32, %c0_i32_0 : i32, i32
  }
  func.func @transform_3(%arg0: i32) -> (i32, i32) {
    %c0_i32 = arith.constant 0 : i32
    %c0_i32_0 = arith.constant 0 : i32
    %c0_i32_1 = arith.constant 0 : i32
    return %c0_i32, %c0_i32_0 : i32, i32
  }
  func.func @transform_4(%arg0: i32) -> (i32, i32) {
    %c0_i32 = arith.constant 0 : i32
    %c0_i32_0 = arith.constant 0 : i32
    %c0_i32_1 = arith.constant 0 : i32
    return %c0_i32, %c0_i32_0 : i32, i32
  }
  func.func @transform_5(%arg0: i32) -> (i32, i32) {
    %c0_i32 = arith.constant 0 : i32
    %c0_i32_0 = arith.constant 0 : i32
    return %arg0, %c0_i32 : i32, i32
  }
}

</mosaic_0001>

<llo_original>
// kernel: tpu_custom_call.1
$region0: #{tpu_custom_call.1}
  #allocation0 [shape = 'u32[]', space=smem, size = 0x4, offset = 0x4, fixed_abs, tag = 'smem constant byte address 0x4 - core index']
  #allocation1 [shape = 'u32[144,128]{1,0:T(1,128)}', space=vmem, size = 0x12000, scoped, tag = 'internal scratch']
  %s0 = inlined_call_operand.hbm [shape: f32[8,32], index: 0, kind: input, shape index: {}]
  %s1 = inlined_call_operand.hbm [shape: f32[32,32], index: 1, kind: input, shape index: {}]
  %s2 = inlined_call_operand.vmem [shape: f32[1,32], index: 2, kind: input, shape index: {}]
  %s3 = inlined_call_operand.hbm [shape: f32[32,128], index: 3, kind: input, shape index: {}]
  %s4 = inlined_call_operand.vmem [shape: f32[1,128], index: 4, kind: input, shape index: {}]
  %s5 = inlined_call_operand.hbm [shape: f32[8,128], index: 5, kind: output, shape index: {}]
  %s6 = sld [smem:[#allocation0]]
  $region42: #{tpu_custom_call.1} parent=0
    _
  %s8 = ssub.s32 1, %s6
  %s9 = scalar_select 0, %s8, %s6
  $region1: #{tpu_custom_call.1} parent=0
    #allocation2 [shape = 'u8[8192]{0}', space=vmem, size = 0x2000, scoped, tag = 'input window, operand 0, single buffered']
    #allocation3 [shape = 's32[1]{0}', space=sflag, size = 0x4, scoped, tag = 'scoped memory for tpu_custom_call.1']
    #allocation4 [shape = 's32[1]{0}', space=sflag, size = 0x4, scoped, tag = 'scoped memory for tpu_custom_call.1']
    #allocation5 [shape = 'u8[16384]{0}', space=vmem, size = 0x4000, scoped, tag = 'input window, operand 1, single buffered']
    #allocation6 [shape = 's32[1]{0}', space=sflag, size = 0x4, scoped, tag = 'scoped memory for tpu_custom_call.1']
    #allocation7 [shape = 'u8[16384]{0}', space=vmem, size = 0x4000, scoped, tag = 'input window, operand 3, single buffered']
    #allocation8 [shape = 'u8[8192]{0}', space=vmem, size = 0x2000, scoped, tag = 'output window, operand 0, single buffered']
    %10 = vsyncpa [#allocation3], 0
    %11 = vsyncpa [#allocation6], 0
    %12 = vsyncpa [#allocation4], 0
    // Predicated region
    $region2: #{tpu_custom_call.1} parent=1 // pred_check
      _
    $region3: #{tpu_custom_call.1} parent=1 // pred_check_branch
      %14 = sbr.rel (0) target = $region5
    $region4: #{tpu_custom_call.1} parent=1 // pred_region
      %s16 = ssub.s32 256, 128
      %17 = vsyncadd [#allocation3], %s16
      %s18 = sshll.u32 [#allocation2], 4
      %s19 = int_to_ptr.vmem [resolvable:$true] %s18
      %24 = dma.hbm_to_vmem [thread:$0]  %s0, 128, %s19, [#allocation3], 128, 128, 8
    $region5: #{tpu_custom_call.1} parent=1 // pred_fallthru
      _
    // Predicated region
    $region6: #{tpu_custom_call.1} parent=1 // pred_check
      _
    $region7: #{tpu_custom_call.1} parent=1 // pred_check_branch
      %26 = sbr.rel (0) target = $region9
    $region8: #{tpu_custom_call.1} parent=1 // pred_region
      %s28 = ssub.s32 512, 512
      %29 = vsyncadd [#allocation6], %s28
      %s30 = sshll.u32 [#allocation5], 4
      %s31 = int_to_ptr.vmem [resolvable:$true] %s30
      %36 = dma.hbm_to_vmem [thread:$0]  %s1, 512, %s31, [#allocation6], 128, 128, 8
    $region9: #{tpu_custom_call.1} parent=1 // pred_fallthru
      _
    // Predicated region
    $region10: #{tpu_custom_call.1} parent=1 // pred_check
      _
    $region11: #{tpu_custom_call.1} parent=1 // pred_check_branch
      %38 = sbr.rel (0) target = $region13
    $region12: #{tpu_custom_call.1} parent=1 // pred_region
      _
    $region13: #{tpu_custom_call.1} parent=1 // pred_fallthru
      _
    // Predicated region
    $region14: #{tpu_custom_call.1} parent=1 // pred_check
      _
    $region15: #{tpu_custom_call.1} parent=1 // pred_check_branch
      %40 = sbr.rel (0) target = $region17
    $region16: #{tpu_custom_call.1} parent=1 // pred_region
      %s42 = ssub.s32 512, 512
      %43 = vsyncadd [#allocation6], %s42
      %s44 = sshll.u32 [#allocation7], 4
      %s45 = int_to_ptr.vmem [resolvable:$true] %s44
      %50 = dma.hbm_to_vmem [thread:$0]  %s3, 512, %s45, [#allocation6], 128, 128, 8
    $region17: #{tpu_custom_call.1} parent=1 // pred_fallthru
      _
    // Predicated region
    $region18: #{tpu_custom_call.1} parent=1 // pred_check
      _
    $region19: #{tpu_custom_call.1} parent=1 // pred_check_branch
      %52 = sbr.rel (0) target = $region21
    $region20: #{tpu_custom_call.1} parent=1 // pred_region
      _
    $region21: #{tpu_custom_call.1} parent=1 // pred_fallthru
      _
    // Predicated region
    $region22: #{tpu_custom_call.1} parent=1 // pred_check
      _
    $region23: #{tpu_custom_call.1} parent=1 // pred_check_branch
      %54 = sbr.rel (0) target = $region25
    $region24: #{tpu_custom_call.1} parent=1 // pred_region
      %55 = dma.done [#allocation3], 256
    $region25: #{tpu_custom_call.1} parent=1 // pred_fallthru
      _
    // Predicated region
    $region26: #{tpu_custom_call.1} parent=1 // pred_check
      _
    $region27: #{tpu_custom_call.1} parent=1 // pred_check_branch
      %57 = sbr.rel (0) target = $region29
    $region28: #{tpu_custom_call.1} parent=1 // pred_region
      %58 = dma.done [#allocation6], 512
    $region29: #{tpu_custom_call.1} parent=1 // pred_fallthru
      _
    // Predicated region
    $region30: #{tpu_custom_call.1} parent=1 // pred_check
      _
    $region31: #{tpu_custom_call.1} parent=1 // pred_check_branch
      %60 = sbr.rel (0) target = $region33
    $region32: #{tpu_custom_call.1} parent=1 // pred_region
      %61 = dma.done [#allocation6], 512
    $region33: #{tpu_custom_call.1} parent=1 // pred_fallthru
      _
    %v62 = vld [vmem:[#allocation2] sm:$0xff]
    %v63 = vld [vmem:[#allocation2 + $0x8] sm:$0xff]
    %v64 = vld [vmem:[#allocation5] sm:$0xff]
    %v65 = vld [vmem:[#allocation5 + $0x8] sm:$0xff]
    %v66 = vld [vmem:[#allocation5 + $0x10] sm:$0xff]
    %v67 = vld [vmem:[#allocation5 + $0x18] sm:$0xff]
    %v68 = vld [vmem:[%s2] sm:$0x1]
    %v70 = vlaneseq
    %v71 = vshrl.u32 %v70, 7
    %v72 = vsub.s32 0, %v71
    %v73 = vrot.slane %v68, %v72
    %vm75 = vcmask 261120
    %v77 = vsel %vm75, %v62, 0
    %v80 = vsel %vm75, %v63, 0
    %82 = vmatprep.subr.mxu0 0.0
    %83 = vmatpush1.msra.mxu0 %v64
    %84 = vmatprep.subr.mxu0 0.0
    %85 = vmatpush1.msra.mxu0 %v65
    %86 = vmatprep.subr.mxu0 0.0
    %87 = vmatpush1.msra.mxu0 %v66
    %88 = vmatprep.subr.mxu0 0.0
    %89 = vmatpush1.msra.mxu0 %v67
    %90 = vmatprep.subr.mxu0 0.0
    %91 = vmatpush1.msra.mxu0 0.0
    %92 = vmatprep.subr.mxu0 0.0
    %93 = vmatpush1.msra.mxu0 0.0
    %94 = vmatprep.subr.mxu0 0.0
    %95 = vmatpush1.msra.mxu0 0.0
    %96 = vmatprep.subr.mxu0 0.0
    %97 = vmatpush1.msra.mxu0 0.0
    %98 = vmatprep.subr.mxu0 0.0
    %99 = vmatpush1.msra.mxu0 0.0
    %100 = vmatprep.subr.mxu0 0.0
    %101 = vmatpush1.msra.mxu0 0.0
    %102 = vmatprep.subr.mxu0 0.0
    %103 = vmatpush1.msra.mxu0 0.0
    %104 = vmatprep.subr.mxu0 0.0
    %105 = vmatpush1.msra.mxu0 0.0
    %106 = vmatprep.subr.mxu0 0.0
    %107 = vmatpush1.msra.mxu0 0.0
    %108 = vmatprep.subr.mxu0 0.0
    %109 = vmatpush1.msra.mxu0 0.0
    %110 = vmatprep.subr.mxu0 0.0
    %111 = vmatpush1.msra.mxu0 0.0
    %112 = vmatprep.subr.mxu0 0.0
    %113 = vmatpush1.msra.mxu0 0.0
    %114 = vmatprep.subr.mxu0 0.0
    %115 = vmatpush1.msra.mxu0 0.0
    %116 = vmatprep.subr.mxu0 0.0
    %117 = vmatpush1.msra.mxu0 0.0
    %118 = vmatprep.subr.mxu0 0.0
    %119 = vmatpush1.msra.mxu0 0.0
    %120 = vmatprep.subr.mxu0 0.0
    %121 = vmatpush1.msra.mxu0 0.0
    %122 = vmatprep.subr.mxu0 0.0
    %123 = vmatpush1.msra.mxu0 0.0
    %124 = vmatprep.subr.mxu0 0.0
    %125 = vmatpush1.msra.mxu0 0.0
    %126 = vmatprep.subr.mxu0 0.0
    %127 = vmatpush1.msra.mxu0 0.0
    %128 = vmatprep.subr.mxu0 0.0
    %129 = vmatpush1.msra.mxu0 0.0
    %130 = vmatprep.subr.mxu0 0.0
    %131 = vmatpush1.msra.mxu0 0.0
    %132 = vmatprep.subr.mxu0 0.0
    %133 = vmatpush1.msra.mxu0 0.0
    %134 = vmatprep.subr.mxu0 0.0
    %135 = vmatpush1.msra.mxu0 0.0
    %136 = vmatprep.subr.mxu0 0.0
    %137 = vmatpush1.msra.mxu0 0.0
    %138 = vmatprep.subr.mxu0 0.0
    %139 = vmatpush1.msra.mxu0 0.0
    %140 = vmatprep.subr.mxu0 0.0
    %141 = vmatpush1.msra.mxu0 0.0
    %142 = vmatprep.subr.mxu0 0.0
    %143 = vmatpush1.msra.mxu0 0.0
    %144 = vmatprep.subr.mxu0 0.0
    %145 = vmatpush1.msra.mxu0 0.0
    %146 = vmatprep.mubr.f32.mxu0 0.0
    %147 = vmatmul.mubr.f32.gmra.mrb[0].mxu0 %v77
    %v148 = vpop.f32.mrb[0].mxu0
    %v149 = vadd.f32 %v73, %v148
    %v150 = vpop.f32.mrb[0].mxu0
    %151 = vmatprep.mubr.f32.mxu0 0.0
    %152 = vmatmul.mubr.f32.gmra.mrb[0].mxu0 %v80
    %v153 = vpop.f32.mrb[0].mxu0
    %v154 = vadd.f32 %v73, %v153
    %v155 = vpop.f32.mrb[0].mxu0
    %156 = vdwg.mxu0
    %v157 = vmax.f32 %v149, 0.0
    %v158 = vmax.f32 %v154, 0.0
    %v159 = vld [vmem:[#allocation7] sm:$0xff]
    %v160 = vld [vmem:[#allocation7 + $0x8] sm:$0xff]
    %v161 = vld [vmem:[#allocation7 + $0x10] sm:$0xff]
    %v162 = vld [vmem:[#allocation7 + $0x18] sm:$0xff]
    %v163 = vld [vmem:[%s4] sm:$0x1]
    %v165 = vlaneseq
    %v166 = vshrl.u32 %v165, 7
    %v167 = vsub.s32 0, %v166
    %v168 = vrot.slane %v163, %v167
    %v171 = vsel %vm75, %v157, 0
    %v174 = vsel %vm75, %v158, 0
    %176 = vmatprep.subr.mxu0 0.0
    %177 = vmatpush1.msra.mxu0 %v159
    %178 = vmatprep.subr.mxu0 0.0
    %179 = vmatpush1.msra.mxu0 %v160
    %180 = vmatprep.subr.mxu0 0.0
    %181 = vmatpush1.msra.mxu0 %v161
    %182 = vmatprep.subr.mxu0 0.0
    %183 = vmatpush1.msra.mxu0 %v162
    %184 = vmatprep.subr.mxu0 0.0
    %185 = vmatpush1.msra.mxu0 0.0
    %186 = vmatprep.subr.mxu0 0.0
    %187 = vmatpush1.msra.mxu0 0.0
    %188 = vmatprep.subr.mxu0 0.0
    %189 = vmatpush1.msra.mxu0 0.0
    %190 = vmatprep.subr.mxu0 0.0
    %191 = vmatpush1.msra.mxu0 0.0
    %192 = vmatprep.subr.mxu0 0.0
    %193 = vmatpush1.msra.mxu0 0.0
    %194 = vmatprep.subr.mxu0 0.0
    %195 = vmatpush1.msra.mxu0 0.0
    %196 = vmatprep.subr.mxu0 0.0
    %197 = vmatpush1.msra.mxu0 0.0
    %198 = vmatprep.subr.mxu0 0.0
    %199 = vmatpush1.msra.mxu0 0.0
    %200 = vmatprep.subr.mxu0 0.0
    %201 = vmatpush1.msra.mxu0 0.0
    %202 = vmatprep.subr.mxu0 0.0
    %203 = vmatpush1.msra.mxu0 0.0
    %204 = vmatprep.subr.mxu0 0.0
    %205 = vmatpush1.msra.mxu0 0.0
    %206 = vmatprep.subr.mxu0 0.0
    %207 = vmatpush1.msra.mxu0 0.0
    %208 = vmatprep.subr.mxu0 0.0
    %209 = vmatpush1.msra.mxu0 0.0
    %210 = vmatprep.subr.mxu0 0.0
    %211 = vmatpush1.msra.mxu0 0.0
    %212 = vmatprep.subr.mxu0 0.0
    %213 = vmatpush1.msra.mxu0 0.0
    %214 = vmatprep.subr.mxu0 0.0
    %215 = vmatpush1.msra.mxu0 0.0
    %216 = vmatprep.subr.mxu0 0.0
    %217 = vmatpush1.msra.mxu0 0.0
    %218 = vmatprep.subr.mxu0 0.0
    %219 = vmatpush1.msra.mxu0 0.0
    %220 = vmatprep.subr.mxu0 0.0
    %221 = vmatpush1.msra.mxu0 0.0
    %222 = vmatprep.subr.mxu0 0.0
    %223 = vmatpush1.msra.mxu0 0.0
    %224 = vmatprep.subr.mxu0 0.0
    %225 = vmatpush1.msra.mxu0 0.0
    %226 = vmatprep.subr.mxu0 0.0
    %227 = vmatpush1.msra.mxu0 0.0
    %228 = vmatprep.subr.mxu0 0.0
    %229 = vmatpush1.msra.mxu0 0.0
    %230 = vmatprep.subr.mxu0 0.0
    %231 = vmatpush1.msra.mxu0 0.0
    %232 = vmatprep.subr.mxu0 0.0
    %233 = vmatpush1.msra.mxu0 0.0
    %234 = vmatprep.subr.mxu0 0.0
    %235 = vmatpush1.msra.mxu0 0.0
    %236 = vmatprep.subr.mxu0 0.0
    %237 = vmatpush1.msra.mxu0 0.0
    %238 = vmatprep.subr.mxu0 0.0
    %239 = vmatpush1.msra.mxu0 0.0
    %240 = vmatprep.mubr.f32.mxu0 0.0
    %241 = vmatmul.mubr.f32.gmra.mrb[0].mxu0 %v171
    %v242 = vpop.f32.mrb[0].mxu0
    %v243 = vadd.f32 %v168, %v242
    %v244 = vpop.f32.mrb[0].mxu0
    %245 = vmatprep.mubr.f32.mxu0 0.0
    %246 = vmatmul.mubr.f32.gmra.mrb[0].mxu0 %v174
    %v247 = vpop.f32.mrb[0].mxu0
    %v248 = vadd.f32 %v168, %v247
    %v249 = vpop.f32.mrb[0].mxu0
    %250 = vdwg.mxu0
    %251 = vst [vmem:[#allocation8] sm:$0xff] %v243
    %252 = vst [vmem:[#allocation8 + $0x8] sm:$0xff] %v248
    // Predicated region
    $region34: #{tpu_custom_call.1} parent=1 // pred_check
      _
    $region35: #{tpu_custom_call.1} parent=1 // pred_check_branch
      %254 = sbr.rel (0) target = $region37
    $region36: #{tpu_custom_call.1} parent=1 // pred_region
      %s256 = ssub.s32 256, 128
      %257 = vsyncadd [#allocation4], %s256
      %s258 = sshll.u32 [#allocation8], 4
      %s259 = int_to_ptr.vmem [resolvable:$true] %s258
      %264 = dma.vmem_to_hbm [thread:$0]  %s259, 128, %s5, [#allocation4], 128, 128, 8
    $region37: #{tpu_custom_call.1} parent=1 // pred_fallthru
      _
    // Predicated region
    $region38: #{tpu_custom_call.1} parent=1 // pred_check
      _
    $region39: #{tpu_custom_call.1} parent=1 // pred_check_branch
      %266 = sbr.rel (0) target = $region41
    $region40: #{tpu_custom_call.1} parent=1 // pred_region
      %267 = dma.done [#allocation4], 256
    $region41: #{tpu_custom_call.1} parent=1 // pred_fallthru
      _
    %268 = vsyncpa [#allocation3], 1
    %269 = vsyncpa [#allocation6], 1
    %270 = vsyncpa [#allocation4], 1

// kernel: tpu_custom_call.1
$region0: #{tpu_custom_call.1}
  #allocation0 [shape = 'u32[]', space=smem, size = 0x4, offset = 0x4, fixed_abs, tag = 'smem constant byte address 0x4 - core index']
  #allocation1 [shape = 'u32[144,128]{1,0:T(1,128)}', space=vmem, size = 0x12000, scoped, tag = 'internal scratch']
  %s0 = inlined_call_operand.hbm [shape: f32[8,32], index: 0, kind: input, shape index: {}]
  %s1 = inlined_call_operand.hbm [shape: f32[32,32], index: 1, kind: input, shape index: {}]
  %s2 = inlined_call_operand.vmem [shape: f32[1,32], index: 2, kind: input, shape index: {}]
  %s3 = inlined_call_operand.hbm [shape: f32[32,128], index: 3, kind: input, shape index: {}]
  %s4 = inlined_call_operand.vmem [shape: f32[1,128], index: 4, kind: input, shape index: {}]
  %s5 = inlined_call_operand.hbm [shape: f32[8,128], index: 5, kind: output, shape index: {}]
  %s6 = sld [smem:[#allocation0]]
  $region42: #{tpu_custom_call.1} parent=0
    _
  %s8 = ssub.s32 1, %s6
  %s9 = scalar_select 0, %s8, %s6
  $region1: #{tpu_custom_call.1} parent=0
    #allocation2 [shape = 'u8[8192]{0}', space=vmem, size = 0x2000, scoped, tag = 'input window, operand 0, single buffered']
    #allocation3 [shape = 's32[1]{0}', space=sflag, size = 0x4, scoped, tag = 'scoped memory for tpu_custom_call.1']
    #allocation4 [shape = 's32[1]{0}', space=sflag, size = 0x4, scoped, tag = 'scoped memory for tpu_custom_call.1']
    #allocation5 [shape = 'u8[16384]{0}', space=vmem, size = 0x4000, scoped, tag = 'input window, operand 1, single buffered']
    #allocation6 [shape = 's32[1]{0}', space=sflag, size = 0x4, scoped, tag = 'scoped memory for tpu_custom_call.1']
    #allocation7 [shape = 'u8[16384]{0}', space=vmem, size = 0x4000, scoped, tag = 'input window, operand 3, single buffered']
    #allocation8 [shape = 'u8[8192]{0}', space=vmem, size = 0x2000, scoped, tag = 'output window, operand 0, single buffered']
    %10 = vsyncpa [#allocation3], 0
    %11 = vsyncpa [#allocation6], 0
    %12 = vsyncpa [#allocation4], 0
    // Predicated region
    $region2: #{tpu_custom_call.1} parent=1 // pred_check
      _
    $region3: #{tpu_custom_call.1} parent=1 // pred_check_branch
      %14 = sbr.rel (0) target = $region5
    $region4: #{tpu_custom_call.1} parent=1 // pred_region
      %s16 = ssub.s32 256, 128
      %17 = vsyncadd [#allocation3], %s16
      %s18 = sshll.u32 [#allocation2], 4
      %s19 = int_to_ptr.vmem [resolvable:$true] %s18
      %24 = dma.hbm_to_vmem [thread:$0]  %s0, 128, %s19, [#allocation3], 128, 128, 8
    $region5: #{tpu_custom_call.1} parent=1 // pred_fallthru
      _
    // Predicated region
    $region6: #{tpu_custom_call.1} parent=1 // pred_check
      _
    $region7: #{tpu_custom_call.1} parent=1 // pred_check_branch
      %26 = sbr.rel (0) target = $region9
    $region8: #{tpu_custom_call.1} parent=1 // pred_region
      %s28 = ssub.s32 512, 512
      %29 = vsyncadd [#allocation6], %s28
      %s30 = sshll.u32 [#allocation5], 4
      %s31 = int_to_ptr.vmem [resolvable:$true] %s30
      %36 = dma.hbm_to_vmem [thread:$0]  %s1, 512, %s31, [#allocation6], 128, 128, 8
    $region9: #{tpu_custom_call.1} parent=1 // pred_fallthru
      _
    // Predicated region
    $region10: #{tpu_custom_call.1} parent=1 // pred_check
      _
    $region11: #{tpu_custom_call.1} parent=1 // pred_check_branch
      %38 = sbr.rel (0) target = $region13
    $region12: #{tpu_custom_call.1} parent=1 // pred_region
      _
    $region13: #{tpu_custom_call.1} parent=1 // pred_fallthru
      _
    // Predicated region
    $region14: #{tpu_custom_call.1} parent=1 // pred_check
      _
    $region15: #{tpu_custom_call.1} parent=1 // pred_check_branch
      %40 = sbr.rel (0) target = $region17
    $region16: #{tpu_custom_call.1} parent=1 // pred_region
      %s42 = ssub.s32 512, 512
      %43 = vsyncadd [#allocation6], %s42
      %s44 = sshll.u32 [#allocation7], 4
      %s45 = int_to_ptr.vmem [resolvable:$true] %s44
      %50 = dma.hbm_to_vmem [thread:$0]  %s3, 512, %s45, [#allocation6], 128, 128, 8
    $region17: #{tpu_custom_call.1} parent=1 // pred_fallthru
      _
    // Predicated region
    $region18: #{tpu_custom_call.1} parent=1 // pred_check
      _
    $region19: #{tpu_custom_call.1} parent=1 // pred_check_branch
      %52 = sbr.rel (0) target = $region21
    $region20: #{tpu_custom_call.1} parent=1 // pred_region
      _
    $region21: #{tpu_custom_call.1} parent=1 // pred_fallthru
      _
    // Predicated region
    $region22: #{tpu_custom_call.1} parent=1 // pred_check
      _
    $region23: #{tpu_custom_call.1} parent=1 // pred_check_branch
      %54 = sbr.rel (0) target = $region25
    $region24: #{tpu_custom_call.1} parent=1 // pred_region
      %55 = dma.done [#allocation3], 256
    $region25: #{tpu_custom_call.1} parent=1 // pred_fallthru
      _
    // Predicated region
    $region26: #{tpu_custom_call.1} parent=1 // pred_check
      _
    $region27: #{tpu_custom_call.1} parent=1 // pred_check_branch
      %57 = sbr.rel (0) target = $region29
    $region28: #{tpu_custom_call.1} parent=1 // pred_region
      %58 = dma.done [#allocation6], 512
    $region29: #{tpu_custom_call.1} parent=1 // pred_fallthru
      _
    // Predicated region
    $region30: #{tpu_custom_call.1} parent=1 // pred_check
      _
    $region31: #{tpu_custom_call.1} parent=1 // pred_check_branch
      %60 = sbr.rel (0) target = $region33
    $region32: #{tpu_custom_call.1} parent=1 // pred_region
      %61 = dma.done [#allocation6], 512
    $region33: #{tpu_custom_call.1} parent=1 // pred_fallthru
      _
    %v62 = vld [vmem:[#allocation2] sm:$0xff]
    %v63 = vld [vmem:[#allocation2 + $0x8] sm:$0xff]
    %v64 = vld [vmem:[#allocation5] sm:$0xff]
    %v65 = vld [vmem:[#allocation5 + $0x8] sm:$0xff]
    %v66 = vld [vmem:[#allocation5 + $0x10] sm:$0xff]
    %v67 = vld [vmem:[#allocation5 + $0x18] sm:$0xff]
    %v68 = vld [vmem:[%s2] sm:$0x1]
    %v70 = vlaneseq
    %v71 = vshrl.u32 %v70, 7
    %v72 = vsub.s32 0, %v71
    %v73 = vrot.slane %v68, %v72
    %vm75 = vcmask 261120
    %v77 = vsel %vm75, %v62, 0
    %v80 = vsel %vm75, %v63, 0
    %82 = vmatprep.subr.mxu0 0.0
    %83 = vmatpush1.msra.mxu0 %v64
    %84 = vmatprep.subr.mxu0 0.0
    %85 = vmatpush1.msra.mxu0 %v65
    %86 = vmatprep.subr.mxu0 0.0
    %87 = vmatpush1.msra.mxu0 %v66
    %88 = vmatprep.subr.mxu0 0.0
    %89 = vmatpush1.msra.mxu0 %v67
    %90 = vmatprep.subr.mxu0 0.0
    %91 = vmatpush1.msra.mxu0 0.0
    %92 = vmatprep.subr.mxu0 0.0
    %93 = vmatpush1.msra.mxu0 0.0
    %94 = vmatprep.subr.mxu0 0.0
    %95 = vmatpush1.msra.mxu0 0.0
    %96 = vmatprep.subr.mxu0 0.0
    %97 = vmatpush1.msra.mxu0 0.0
    %98 = vmatprep.subr.mxu0 0.0
    %99 = vmatpush1.msra.mxu0 0.0
    %100 = vmatprep.subr.mxu0 0.0
    %101 = vmatpush1.msra.mxu0 0.0
    %102 = vmatprep.subr.mxu0 0.0
    %103 = vmatpush1.msra.mxu0 0.0
    %104 = vmatprep.subr.mxu0 0.0
    %105 = vmatpush1.msra.mxu0 0.0
    %106 = vmatprep.subr.mxu0 0.0
    %107 = vmatpush1.msra.mxu0 0.0
    %108 = vmatprep.subr.mxu0 0.0
    %109 = vmatpush1.msra.mxu0 0.0
    %110 = vmatprep.subr.mxu0 0.0
    %111 = vmatpush1.msra.mxu0 0.0
    %112 = vmatprep.subr.mxu0 0.0
    %113 = vmatpush1.msra.mxu0 0.0
    %114 = vmatprep.subr.mxu0 0.0
    %115 = vmatpush1.msra.mxu0 0.0
    %116 = vmatprep.subr.mxu0 0.0
    %117 = vmatpush1.msra.mxu0 0.0
    %118 = vmatprep.subr.mxu0 0.0
    %119 = vmatpush1.msra.mxu0 0.0
    %120 = vmatprep.subr.mxu0 0.0
    %121 = vmatpush1.msra.mxu0 0.0
    %122 = vmatprep.subr.mxu0 0.0
    %123 = vmatpush1.msra.mxu0 0.0
    %124 = vmatprep.subr.mxu0 0.0
    %125 = vmatpush1.msra.mxu0 0.0
    %126 = vmatprep.subr.mxu0 0.0
    %127 = vmatpush1.msra.mxu0 0.0
    %128 = vmatprep.subr.mxu0 0.0
    %129 = vmatpush1.msra.mxu0 0.0
    %130 = vmatprep.subr.mxu0 0.0
    %131 = vmatpush1.msra.mxu0 0.0
    %132 = vmatprep.subr.mxu0 0.0
    %133 = vmatpush1.msra.mxu0 0.0
    %134 = vmatprep.subr.mxu0 0.0
    %135 = vmatpush1.msra.mxu0 0.0
    %136 = vmatprep.subr.mxu0 0.0
    %137 = vmatpush1.msra.mxu0 0.0
    %138 = vmatprep.subr.mxu0 0.0
    %139 = vmatpush1.msra.mxu0 0.0
    %140 = vmatprep.subr.mxu0 0.0
    %141 = vmatpush1.msra.mxu0 0.0
    %142 = vmatprep.subr.mxu0 0.0
    %143 = vmatpush1.msra.mxu0 0.0
    %144 = vmatprep.subr.mxu0 0.0
    %145 = vmatpush1.msra.mxu0 0.0
    %146 = vmatprep.mubr.f32.mxu0 0.0
    %147 = vmatmul.mubr.f32.gmra.mrb[0].mxu0 %v77
    %v148 = vpop.f32.mrb[0].mxu0
    %v149 = vadd.f32 %v73, %v148
    %v150 = vpop.f32.mrb[0].mxu0
    %151 = vmatprep.mubr.f32.mxu0 0.0
    %152 = vmatmul.mubr.f32.gmra.mrb[0].mxu0 %v80
    %v153 = vpop.f32.mrb[0].mxu0
    %v154 = vadd.f32 %v73, %v153
    %v155 = vpop.f32.mrb[0].mxu0
    %156 = vdwg.mxu0
    %v157 = vmax.f32 %v149, 0.0
    %v158 = vmax.f32 %v154, 0.0
    %v159 = vld [vmem:[#allocation7] sm:$0xff]
    %v160 = vld [vmem:[#allocation7 + $0x8] sm:$0xff]
    %v161 = vld [vmem:[#allocation7 + $0x10] sm:$0xff]
    %v162 = vld [vmem:[#allocation7 + $0x18] sm:$0xff]
    %v163 = vld [vmem:[%s4] sm:$0x1]
    %v165 = vlaneseq
    %v166 = vshrl.u32 %v165, 7
    %v167 = vsub.s32 0, %v166
    %v168 = vrot.slane %v163, %v167
    %v171 = vsel %vm75, %v157, 0
    %v174 = vsel %vm75, %v158, 0
    %176 = vmatprep.subr.mxu0 0.0
    %177 = vmatpush1.msra.mxu0 %v159
    %178 = vmatprep.subr.mxu0 0.0
    %179 = vmatpush1.msra.mxu0 %v160
    %180 = vmatprep.subr.mxu0 0.0
    %181 = vmatpush1.msra.mxu0 %v161
    %182 = vmatprep.subr.mxu0 0.0
    %183 = vmatpush1.msra.mxu0 %v162
    %184 = vmatprep.subr.mxu0 0.0
    %185 = vmatpush1.msra.mxu0 0.0
    %186 = vmatprep.subr.mxu0 0.0
    %187 = vmatpush1.msra.mxu0 0.0
    %188 = vmatprep.subr.mxu0 0.0
    %189 = vmatpush1.msra.mxu0 0.0
    %190 = vmatprep.subr.mxu0 0.0
    %191 = vmatpush1.msra.mxu0 0.0
    %192 = vmatprep.subr.mxu0 0.0
    %193 = vmatpush1.msra.mxu0 0.0
    %194 = vmatprep.subr.mxu0 0.0
    %195 = vmatpush1.msra.mxu0 0.0
    %196 = vmatprep.subr.mxu0 0.0
    %197 = vmatpush1.msra.mxu0 0.0
    %198 = vmatprep.subr.mxu0 0.0
    %199 = vmatpush1.msra.mxu0 0.0
    %200 = vmatprep.subr.mxu0 0.0
    %201 = vmatpush1.msra.mxu0 0.0
    %202 = vmatprep.subr.mxu0 0.0
    %203 = vmatpush1.msra.mxu0 0.0
    %204 = vmatprep.subr.mxu0 0.0
    %205 = vmatpush1.msra.mxu0 0.0
    %206 = vmatprep.subr.mxu0 0.0
    %207 = vmatpush1.msra.mxu0 0.0
    %208 = vmatprep.subr.mxu0 0.0
    %209 = vmatpush1.msra.mxu0 0.0
    %210 = vmatprep.subr.mxu0 0.0
    %211 = vmatpush1.msra.mxu0 0.0
    %212 = vmatprep.subr.mxu0 0.0
    %213 = vmatpush1.msra.mxu0 0.0
    %214 = vmatprep.subr.mxu0 0.0
    %215 = vmatpush1.msra.mxu0 0.0
    %216 = vmatprep.subr.mxu0 0.0
    %217 = vmatpush1.msra.mxu0 0.0
    %218 = vmatprep.subr.mxu0 0.0
    %219 = vmatpush1.msra.mxu0 0.0
    %220 = vmatprep.subr.mxu0 0.0
    %221 = vmatpush1.msra.mxu0 0.0
    %222 = vmatprep.subr.mxu0 0.0
    %223 = vmatpush1.msra.mxu0 0.0
    %224 = vmatprep.subr.mxu0 0.0
    %225 = vmatpush1.msra.mxu0 0.0
    %226 = vmatprep.subr.mxu0 0.0
    %227 = vmatpush1.msra.mxu0 0.0
    %228 = vmatprep.subr.mxu0 0.0
    %229 = vmatpush1.msra.mxu0 0.0
    %230 = vmatprep.subr.mxu0 0.0
    %231 = vmatpush1.msra.mxu0 0.0
    %232 = vmatprep.subr.mxu0 0.0
    %233 = vmatpush1.msra.mxu0 0.0
    %234 = vmatprep.subr.mxu0 0.0
    %235 = vmatpush1.msra.mxu0 0.0
    %236 = vmatprep.subr.mxu0 0.0
    %237 = vmatpush1.msra.mxu0 0.0
    %238 = vmatprep.subr.mxu0 0.0
    %239 = vmatpush1.msra.mxu0 0.0
    %240 = vmatprep.mubr.f32.mxu0 0.0
    %241 = vmatmul.mubr.f32.gmra.mrb[0].mxu0 %v171
    %v242 = vpop.f32.mrb[0].mxu0
    %v243 = vadd.f32 %v168, %v242
    %v244 = vpop.f32.mrb[0].mxu0
    %245 = vmatprep.mubr.f32.mxu0 0.0
    %246 = vmatmul.mubr.f32.gmra.mrb[0].mxu0 %v174
    %v247 = vpop.f32.mrb[0].mxu0
    %v248 = vadd.f32 %v168, %v247
    %v249 = vpop.f32.mrb[0].mxu0
    %250 = vdwg.mxu0
    %251 = vst [vmem:[#allocation8] sm:$0xff] %v243
    %252 = vst [vmem:[#allocation8 + $0x8] sm:$0xff] %v248
    // Predicated region
    $region34: #{tpu_custom_call.1} parent=1 // pred_check
      _
    $region35: #{tpu_custom_call.1} parent=1 // pred_check_branch
      %254 = sbr.rel (0) target = $region37
    $region36: #{tpu_custom_call.1} parent=1 // pred_region
      %s256 = ssub.s32 256, 128
      %257 = vsyncadd [#allocation4], %s256
      %s258 = sshll.u32 [#allocation8], 4
      %s259 = int_to_ptr.vmem [resolvable:$true] %s258
      %264 = dma.vmem_to_hbm [thread:$0]  %s259, 128, %s5, [#allocation4], 128, 128, 8
    $region37: #{tpu_custom_call.1} parent=1 // pred_fallthru
      _
    // Predicated region
    $region38: #{tpu_custom_call.1} parent=1 // pred_check
      _
    $region39: #{tpu_custom_call.1} parent=1 // pred_check_branch
      %266 = sbr.rel (0) target = $region41
    $region40: #{tpu_custom_call.1} parent=1 // pred_region
      %267 = dma.done [#allocation4], 256
    $region41: #{tpu_custom_call.1} parent=1 // pred_fallthru
      _
    %268 = vsyncpa [#allocation3], 1
    %269 = vsyncpa [#allocation6], 1
    %270 = vsyncpa [#allocation4], 1

</llo_original>
